<compile_context>
chip_gen: v6e
topology: v6e:2x2x1
jax: 0.10.0
libtpu: 0.0.40
codegen_flags: <defaults>
</compile_context>

<pallas_src>
import jax
import jax.numpy as jnp
from jax.experimental import pallas as pl
from jax.experimental.pallas import tpu as pltpu

C_IN = 1
C_OUT = 50
K = 7
L_IN = 15
L_OUT = L_IN - K + 1        # 9
N_COLS = C_OUT * L_OUT      # 450
N_PAD = 512                 # padded (c, t) axis, multiple of 8 (sublane dim)
L_PAD = L_IN + 1            # 16: conv taps + constant-1 row for the bias
LANE = 128                  # TPU lane width


def _round_up(x, m):
    return ((x + m - 1) // m) * m


def conv1_model_kernel(w_ref, x_ref, o_ref):
    """Fused Conv1d(k=7) + max over (channels, positions) + sigmoid.

    w_ref: [N_PAD, L_PAD]  f32  im2col-on-weights, bias folded into col 15
    x_ref: [L_PAD, TB]     f32  batch tile on the lane axis (row 15 == 1)
    o_ref: [1, TB]         f32  lane-dense output
    """
    acc = jnp.dot(w_ref[...], x_ref[...],
                  preferred_element_type=jnp.float32)      # [N_PAD, TB]
    # Padded rows evaluate to finfo.min (finite), so one sublane-direction
    # max == max over all (c, t) conv outputs, per batch lane.
    m = jnp.max(acc, axis=0, keepdims=True)                # [1, TB]
    o_ref[...] = jax.nn.sigmoid(m)


def _pack_weights(weight, bias):
    """Build W_bigT [N_PAD, L_PAD] from torch-style conv params.

    Row r = c*L_OUT + t:
      W_bigT[r, l]  = w[c, l - t]  if 0 <= l - t < K else 0   (l < 15)
      W_bigT[r, 15] = bias[c]
    Rows 450..511 are zero with finfo.min in column 15 (never win the max).
    """
    w2d = weight.reshape(C_OUT, K).astype(jnp.float32)            # [50, 7]
    t = jnp.arange(L_OUT)[:, None]                                # [9, 1]
    l = jnp.arange(L_IN)[None, :]                                 # [1, 15]
    k_idx = l - t                                                 # [9, 15]
    valid = ((k_idx >= 0) & (k_idx < K)).astype(jnp.float32)
    k_clamped = jnp.clip(k_idx, 0, K - 1)
    w_expand = w2d[:, k_clamped] * valid[None, :, :]              # [50, 9, 15]
    w_rows = w_expand.reshape(N_COLS, L_IN)                       # [450, 15]

    b_col = jnp.repeat(bias.astype(jnp.float32).reshape(C_OUT),
                       L_OUT).reshape(N_COLS, 1)                  # [450, 1]
    w_rows16 = jnp.concatenate([w_rows, b_col], axis=1)           # [450, 16]

    neg_big = jnp.finfo(jnp.float32).min                          # finite, no NaN risk
    pad_rows = jnp.concatenate(
        [jnp.zeros((N_PAD - N_COLS, L_IN), jnp.float32),
         jnp.full((N_PAD - N_COLS, 1), neg_big, jnp.float32)],
        axis=1)                                                   # [62, 16]
    return jnp.concatenate([w_rows16, pad_rows], axis=0)          # [512, 16]


def conv1_model_forward(x, weight, bias, *, tb_cap=4096):
    """x: [B, 1, 15] f32, weight: [50, 1, 7], bias: [50] -> [B] f32."""
    B = x.shape[0]
    assert x.shape == (B, C_IN, L_IN)

    # x -> [B, 16] with a constant-1 column (bias folding), then transpose so
    # batch is the lane axis.
    x2d = x.reshape(B, L_IN).astype(jnp.float32)
    x16 = jnp.concatenate([x2d, jnp.ones((B, 1), jnp.float32)], axis=1)

    B_pad = _round_up(B, LANE)
    if B_pad != B:
        # Zero-padded batch columns give finite garbage (sigmoid(0)=0.5),
        # sliced off below.
        x16 = jnp.pad(x16, ((0, B_pad - B), (0, 0)))
    xT = x16.T                                                    # [16, B_pad]

    w_bigT = _pack_weights(weight, bias)                          # [512, 16]

    # Batch tile: lane-aligned, capped so the [512, TB] f32 intermediate stays
    # small; guarantee >= 2 grid steps when possible (both TCs on v7x).
    TB = min(tb_cap, B_pad)
    if B_pad > LANE and pl.cdiv(B_pad, TB) < 2:
        TB = _round_up(pl.cdiv(B_pad, 2), LANE)
    grid = (pl.cdiv(B_pad, TB),)

    out = pl.pallas_call(
        conv1_model_kernel,
        out_shape=jax.ShapeDtypeStruct((1, B_pad), jnp.float32),
        grid=grid,
        in_specs=[
            pl.BlockSpec((N_PAD, L_PAD), lambda i: (0, 0)),   # weights stay resident
            pl.BlockSpec((L_PAD, TB), lambda i: (0, i)),      # batch tiles, pipelined
        ],
        out_specs=pl.BlockSpec((1, TB), lambda i: (0, i)),    # lane-dense stores
        compiler_params=pltpu.CompilerParams(
            dimension_semantics=("parallel",),                # 2 TCs on v7x
            vmem_limit_bytes=32 * 1024 * 1024,
        ),
    )(w_bigT, xT)
    return out[0, :B]


def conv1_model_reference(x, weight, bias):
    """Plain-JAX reference of the PyTorch forward, for verification."""
    B = x.shape[0]
    x2d = x.reshape(B, L_IN)
    w2d = weight.reshape(C_OUT, K)
    patches = jnp.stack([x2d[:, t:t + K] for t in range(L_OUT)], axis=1)  # [B, 9, 7]
    o1 = jnp.einsum("btk,ck->bct", patches, w2d) + bias[None, :, None]    # [B, 50, 9]
    o2 = jnp.max(o1, axis=-1)
    o3 = jnp.max(o2, axis=-1)
    return jax.nn.sigmoid(o3)


if __name__ == "__main__":
    key = jax.random.PRNGKey(0)
    k_x, k_w, k_b = jax.random.split(key, 3)

    # PyTorch-style init: U(-1/sqrt(fan_in), 1/sqrt(fan_in)), fan_in = C_IN*K = 7.
    bound = 1.0 / jnp.sqrt(jnp.float32(C_IN * K))
    weight = jax.random.uniform(k_w, (C_OUT, C_IN, K), jnp.float32, -bound, bound)
    bias = jax.random.uniform(k_b, (C_OUT,), jnp.float32, -bound, bound)

    ok = True
    # Small spec-shaped batch, plus a batch that exercises the multi-step grid
    # (>=2 grid steps, partial last block).
    for B in (2, 300):
        x = jax.random.normal(k_x, (B, C_IN, L_IN), dtype=jnp.float32)
        out = jax.block_until_ready(conv1_model_forward(x, weight, bias))
        ref = jax.block_until_ready(conv1_model_reference(x, weight, bias))
        assert out.shape == (B,)
        assert jnp.allclose(out, ref, atol=1e-5, rtol=1e-5), (B, out, ref)

    if ok:
        print("KERNEL_OK")
</pallas_src>

<mosaic_0001>
module attributes {stable_mosaic.version = 11 : i64} {
  func.func @conv1_model_kernel(%arg0: i32, %arg1: memref<512x16xf32, #tpu.memory_space<vmem>>, %arg2: memref<16x128xf32, #tpu.memory_space<vmem>>, %arg3: memref<1x128xf32, #tpu.memory_space<vmem>>) attributes {dimension_semantics = [#tpu.dimension_semantics<parallel>], iteration_bounds = array<i64: 1>, scalar_prefetch = 0 : i64, scratch_operands = 0 : i64, tpu.core_type = #tpu.core_type<tc>, window_params = [{pipeline_mode = #tpu.pipeline_mode<synchronous>, transform_indices = @transform_0, window_bounds = array<i64: 512, 16>}, {transform_indices = @transform_1, window_bounds = array<i64: 16, 128>}, {transform_indices = @transform_2, window_bounds = array<i64: 1, 128>}]} {
    %c0 = arith.constant 0 : index
    %c0_0 = arith.constant 0 : index
    %0 = vector.load %arg1[%c0, %c0_0] : memref<512x16xf32, #tpu.memory_space<vmem>>, vector<512x16xf32>
    %c0_1 = arith.constant 0 : index
    %c0_2 = arith.constant 0 : index
    %1 = vector.load %arg2[%c0_1, %c0_2] : memref<16x128xf32, #tpu.memory_space<vmem>>, vector<16x128xf32>
    %cst = arith.constant dense<0.000000e+00> : vector<512x128xf32>
    %2 = tpu.matmul %0, %1, %cst {dimension_numbers = #tpu.dot_dimension_numbers<[1], [0], [0], [1], [0, 0, 1, 1], [], []>} : vector<512x16xf32>, vector<16x128xf32>, vector<512x128xf32> -> vector<512x128xf32>
    %cst_3 = arith.constant dense<0xFF800000> : vector<128xf32>
    %3 = vector.multi_reduction <maximumf>, %2, %cst_3 [0] : vector<512x128xf32> to vector<128xf32>
    %4 = vector.shape_cast %3 : vector<128xf32> to vector<1x128xf32>
    %5 = arith.negf %4 : vector<1x128xf32>
    %6 = math.exp %5 : vector<1x128xf32>
    %cst_4 = arith.constant 1.000000e+00 : f32
    %7 = vector.broadcast %cst_4 : f32 to vector<1x128xf32>
    %8 = arith.addf %7, %6 : vector<1x128xf32>
    %9 = arith.divf %7, %8 : vector<1x128xf32>
    %c0_5 = arith.constant 0 : index
    %c0_6 = arith.constant 0 : index
    %10 = vector.load %arg3[%c0_5, %c0_6] : memref<1x128xf32, #tpu.memory_space<vmem>>, vector<1x128xf32>
    tpu.vector_store %arg3[%c0_5, %c0_6], %9 {strides = array<i32>} : memref<1x128xf32, #tpu.memory_space<vmem>>, vector<1x128xf32>,
    return
  }
  func.func @transform_0(%arg0: i32) -> (i32, i32) {
    %c0_i32 = arith.constant 0 : i32
    %c0_i32_0 = arith.constant 0 : i32
    %c0_i32_1 = arith.constant 0 : i32
    return %c0_i32, %c0_i32_0 : i32, i32
  }
  func.func @transform_1(%arg0: i32) -> (i32, i32) {
    %c0_i32 = arith.constant 0 : i32
    %c0_i32_0 = arith.constant 0 : i32
    return %c0_i32, %arg0 : i32, i32
  }
  func.func @transform_2(%arg0: i32) -> (i32, i32) {
    %c0_i32 = arith.constant 0 : i32
    %c0_i32_0 = arith.constant 0 : i32
    return %c0_i32, %arg0 : i32, i32
  }
}

</mosaic_0001>

<llo_original>
// kernel: tpu_custom_call.1
$region0: #{tpu_custom_call.1}
  #allocation0 [shape = 'u32[]', space=smem, size = 0x4, offset = 0x4, fixed_abs, tag = 'smem constant byte address 0x4 - core index']
  #allocation1 [shape = 'u32[144,128]{1,0:T(1,128)}', space=vmem, size = 0x12000, scoped, tag = 'internal scratch']
  %s0 = inlined_call_operand.vmem [shape: f32[512,16], index: 0, kind: input, shape index: {}]
  %s1 = inlined_call_operand.vmem [shape: f32[16,128], index: 1, kind: input, shape index: {}]
  %s2 = inlined_call_operand.hbm [shape: f32[1,128], index: 2, kind: output, shape index: {}]
  %s3 = sld [smem:[#allocation0]]
  $region18: #{tpu_custom_call.1} parent=0
    _
  %s5 = ssub.s32 1, %s3
  %s6 = scalar_select 0, %s5, %s3
  $region1: #{tpu_custom_call.1} parent=0
    #allocation2 [shape = 'u8[512]{0}', space=vmem, size = 0x400, scoped, tag = 'output window, operand 0, single buffered']
    #allocation3 [shape = 's32[1]{0}', space=sflag, size = 0x4, scoped, tag = 'scoped memory for tpu_custom_call.1']
    %7 = vsyncpa [#allocation3], 0
    // Predicated region
    $region2: #{tpu_custom_call.1} parent=1 // pred_check
      _
    $region3: #{tpu_custom_call.1} parent=1 // pred_check_branch
      %9 = sbr.rel (0) target = $region5
    $region4: #{tpu_custom_call.1} parent=1 // pred_region
      _
    $region5: #{tpu_custom_call.1} parent=1 // pred_fallthru
      _
    // Predicated region
    $region6: #{tpu_custom_call.1} parent=1 // pred_check
      _
    $region7: #{tpu_custom_call.1} parent=1 // pred_check_branch
      %11 = sbr.rel (0) target = $region9
    $region8: #{tpu_custom_call.1} parent=1 // pred_region
      _
    $region9: #{tpu_custom_call.1} parent=1 // pred_fallthru
      _
    %v12 = vld [vmem:[%s0] sm:$0xff]
    %v13 = vld [vmem:[%s0 + $0x8] sm:$0xff]
    %v14 = vld [vmem:[%s0 + $0x10] sm:$0xff]
    %v15 = vld [vmem:[%s0 + $0x18] sm:$0xff]
    %v16 = vld [vmem:[%s0 + $0x20] sm:$0xff]
    %v17 = vld [vmem:[%s0 + $0x28] sm:$0xff]
    %v18 = vld [vmem:[%s0 + $0x30] sm:$0xff]
    %v19 = vld [vmem:[%s0 + $0x38] sm:$0xff]
    %v20 = vld [vmem:[%s0 + $0x40] sm:$0xff]
    %v21 = vld [vmem:[%s0 + $0x48] sm:$0xff]
    %v22 = vld [vmem:[%s0 + $0x50] sm:$0xff]
    %v23 = vld [vmem:[%s0 + $0x58] sm:$0xff]
    %v24 = vld [vmem:[%s0 + $0x60] sm:$0xff]
    %v25 = vld [vmem:[%s0 + $0x68] sm:$0xff]
    %v26 = vld [vmem:[%s0 + $0x70] sm:$0xff]
    %v27 = vld [vmem:[%s0 + $0x78] sm:$0xff]
    %v28 = vld [vmem:[%s0 + $0x80] sm:$0xff]
    %v29 = vld [vmem:[%s0 + $0x88] sm:$0xff]
    %v30 = vld [vmem:[%s0 + $0x90] sm:$0xff]
    %v31 = vld [vmem:[%s0 + $0x98] sm:$0xff]
    %v32 = vld [vmem:[%s0 + $0xa0] sm:$0xff]
    %v33 = vld [vmem:[%s0 + $0xa8] sm:$0xff]
    %v34 = vld [vmem:[%s0 + $0xb0] sm:$0xff]
    %v35 = vld [vmem:[%s0 + $0xb8] sm:$0xff]
    %v36 = vld [vmem:[%s0 + $0xc0] sm:$0xff]
    %v37 = vld [vmem:[%s0 + $0xc8] sm:$0xff]
    %v38 = vld [vmem:[%s0 + $0xd0] sm:$0xff]
    %v39 = vld [vmem:[%s0 + $0xd8] sm:$0xff]
    %v40 = vld [vmem:[%s0 + $0xe0] sm:$0xff]
    %v41 = vld [vmem:[%s0 + $0xe8] sm:$0xff]
    %v42 = vld [vmem:[%s0 + $0xf0] sm:$0xff]
    %v43 = vld [vmem:[%s0 + $0xf8] sm:$0xff]
    %v44 = vld [vmem:[%s0 + $0x100] sm:$0xff]
    %v45 = vld [vmem:[%s0 + $0x108] sm:$0xff]
    %v46 = vld [vmem:[%s0 + $0x110] sm:$0xff]
    %v47 = vld [vmem:[%s0 + $0x118] sm:$0xff]
    %v48 = vld [vmem:[%s0 + $0x120] sm:$0xff]
    %v49 = vld [vmem:[%s0 + $0x128] sm:$0xff]
    %v50 = vld [vmem:[%s0 + $0x130] sm:$0xff]
    %v51 = vld [vmem:[%s0 + $0x138] sm:$0xff]
    %v52 = vld [vmem:[%s0 + $0x140] sm:$0xff]
    %v53 = vld [vmem:[%s0 + $0x148] sm:$0xff]
    %v54 = vld [vmem:[%s0 + $0x150] sm:$0xff]
    %v55 = vld [vmem:[%s0 + $0x158] sm:$0xff]
    %v56 = vld [vmem:[%s0 + $0x160] sm:$0xff]
    %v57 = vld [vmem:[%s0 + $0x168] sm:$0xff]
    %v58 = vld [vmem:[%s0 + $0x170] sm:$0xff]
    %v59 = vld [vmem:[%s0 + $0x178] sm:$0xff]
    %v60 = vld [vmem:[%s0 + $0x180] sm:$0xff]
    %v61 = vld [vmem:[%s0 + $0x188] sm:$0xff]
    %v62 = vld [vmem:[%s0 + $0x190] sm:$0xff]
    %v63 = vld [vmem:[%s0 + $0x198] sm:$0xff]
    %v64 = vld [vmem:[%s0 + $0x1a0] sm:$0xff]
    %v65 = vld [vmem:[%s0 + $0x1a8] sm:$0xff]
    %v66 = vld [vmem:[%s0 + $0x1b0] sm:$0xff]
    %v67 = vld [vmem:[%s0 + $0x1b8] sm:$0xff]
    %v68 = vld [vmem:[%s0 + $0x1c0] sm:$0xff]
    %v69 = vld [vmem:[%s0 + $0x1c8] sm:$0xff]
    %v70 = vld [vmem:[%s0 + $0x1d0] sm:$0xff]
    %v71 = vld [vmem:[%s0 + $0x1d8] sm:$0xff]
    %v72 = vld [vmem:[%s0 + $0x1e0] sm:$0xff]
    %v73 = vld [vmem:[%s0 + $0x1e8] sm:$0xff]
    %v74 = vld [vmem:[%s0 + $0x1f0] sm:$0xff]
    %v75 = vld [vmem:[%s0 + $0x1f8] sm:$0xff]
    %v76 = vld [vmem:[%s1] sm:$0xff]
    %v77 = vld [vmem:[%s1 + $0x8] sm:$0xff]
    %vm78 = vcmask 130048
    %v80 = vsel %vm78, %v12, 0
    %v83 = vsel %vm78, %v13, 0
    %v86 = vsel %vm78, %v14, 0
    %v89 = vsel %vm78, %v15, 0
    %v92 = vsel %vm78, %v16, 0
    %v95 = vsel %vm78, %v17, 0
    %v98 = vsel %vm78, %v18, 0
    %v101 = vsel %vm78, %v19, 0
    %v104 = vsel %vm78, %v20, 0
    %v107 = vsel %vm78, %v21, 0
    %v110 = vsel %vm78, %v22, 0
    %v113 = vsel %vm78, %v23, 0
    %v116 = vsel %vm78, %v24, 0
    %v119 = vsel %vm78, %v25, 0
    %v122 = vsel %vm78, %v26, 0
    %v125 = vsel %vm78, %v27, 0
    %v128 = vsel %vm78, %v28, 0
    %v131 = vsel %vm78, %v29, 0
    %v134 = vsel %vm78, %v30, 0
    %v137 = vsel %vm78, %v31, 0
    %v140 = vsel %vm78, %v32, 0
    %v143 = vsel %vm78, %v33, 0
    %v146 = vsel %vm78, %v34, 0
    %v149 = vsel %vm78, %v35, 0
    %v152 = vsel %vm78, %v36, 0
    %v155 = vsel %vm78, %v37, 0
    %v158 = vsel %vm78, %v38, 0
    %v161 = vsel %vm78, %v39, 0
    %v164 = vsel %vm78, %v40, 0
    %v167 = vsel %vm78, %v41, 0
    %v170 = vsel %vm78, %v42, 0
    %v173 = vsel %vm78, %v43, 0
    %v176 = vsel %vm78, %v44, 0
    %v179 = vsel %vm78, %v45, 0
    %v182 = vsel %vm78, %v46, 0
    %v185 = vsel %vm78, %v47, 0
    %v188 = vsel %vm78, %v48, 0
    %v191 = vsel %vm78, %v49, 0
    %v194 = vsel %vm78, %v50, 0
    %v197 = vsel %vm78, %v51, 0
    %v200 = vsel %vm78, %v52, 0
    %v203 = vsel %vm78, %v53, 0
    %v206 = vsel %vm78, %v54, 0
    %v209 = vsel %vm78, %v55, 0
    %v212 = vsel %vm78, %v56, 0
    %v215 = vsel %vm78, %v57, 0
    %v218 = vsel %vm78, %v58, 0
    %v221 = vsel %vm78, %v59, 0
    %v224 = vsel %vm78, %v60, 0
    %v227 = vsel %vm78, %v61, 0
    %v230 = vsel %vm78, %v62, 0
    %v233 = vsel %vm78, %v63, 0
    %v236 = vsel %vm78, %v64, 0
    %v239 = vsel %vm78, %v65, 0
    %v242 = vsel %vm78, %v66, 0
    %v245 = vsel %vm78, %v67, 0
    %v248 = vsel %vm78, %v68, 0
    %v251 = vsel %vm78, %v69, 0
    %v254 = vsel %vm78, %v70, 0
    %v257 = vsel %vm78, %v71, 0
    %v260 = vsel %vm78, %v72, 0
    %v263 = vsel %vm78, %v73, 0
    %v266 = vsel %vm78, %v74, 0
    %v269 = vsel %vm78, %v75, 0
    %271 = vmatprep.subr.mxu0 0.0
    %272 = vmatpush1.msra.mxu0 0.0
    %273 = vmatprep.subr.mxu0 0.0
    %274 = vmatpush1.msra.mxu0 0.0
    %275 = vmatprep.subr.mxu0 0.0
    %276 = vmatpush1.msra.mxu0 0.0
    %277 = vmatprep.subr.mxu0 0.0
    %278 = vmatpush1.msra.mxu0 0.0
    %279 = vmatprep.subr.mxu0 0.0
    %280 = vmatpush1.msra.mxu0 0.0
    %281 = vmatprep.subr.mxu0 0.0
    %282 = vmatpush1.msra.mxu0 0.0
    %283 = vmatprep.subr.mxu0 0.0
    %284 = vmatpush1.msra.mxu0 0.0
    %285 = vmatprep.subr.mxu0 0.0
    %286 = vmatpush1.msra.mxu0 0.0
    %287 = vmatprep.subr.mxu0 0.0
    %288 = vmatpush1.msra.mxu0 0.0
    %289 = vmatprep.subr.mxu0 0.0
    %290 = vmatpush1.msra.mxu0 0.0
    %291 = vmatprep.subr.mxu0 0.0
    %292 = vmatpush1.msra.mxu0 0.0
    %293 = vmatprep.subr.mxu0 0.0
    %294 = vmatpush1.msra.mxu0 0.0
    %295 = vmatprep.subr.mxu0 0.0
    %296 = vmatpush1.msra.mxu0 0.0
    %297 = vmatprep.subr.mxu0 0.0
    %298 = vmatpush1.msra.mxu0 0.0
    %299 = vmatprep.subr.mxu0 0.0
    %300 = vmatpush1.msra.mxu0 %v77
    %301 = vmatprep.subr.mxu0 0.0
    %302 = vmatpush1.msra.mxu0 %v76
    %303 = vmatprep.subr.mxu0 0.0
    %304 = vmatpush2.msra.mxu0 0.0
    %305 = vmatprep.subr.mxu0 0.0
    %306 = vmatpush2.msra.mxu0 0.0
    %307 = vmatprep.subr.mxu0 0.0
    %308 = vmatpush2.msra.mxu0 0.0
    %309 = vmatprep.subr.mxu0 0.0
    %310 = vmatpush2.msra.mxu0 0.0
    %311 = vmatprep.subr.mxu0 0.0
    %312 = vmatpush2.msra.mxu0 0.0
    %313 = vmatprep.subr.mxu0 0.0
    %314 = vmatpush2.msra.mxu0 0.0
    %315 = vmatprep.subr.mxu0 0.0
    %316 = vmatpush2.msra.mxu0 0.0
    %317 = vmatprep.subr.mxu0 0.0
    %318 = vmatpush2.msra.mxu0 0.0
    %319 = vmatprep.subr.mxu0 0.0
    %320 = vmatpush2.msra.mxu0 0.0
    %321 = vmatprep.subr.mxu0 0.0
    %322 = vmatpush2.msra.mxu0 0.0
    %323 = vmatprep.subr.mxu0 0.0
    %324 = vmatpush2.msra.mxu0 0.0
    %325 = vmatprep.subr.mxu0 0.0
    %326 = vmatpush2.msra.mxu0 0.0
    %327 = vmatprep.subr.mxu0 0.0
    %328 = vmatpush2.msra.mxu0 0.0
    %329 = vmatprep.subr.mxu0 0.0
    %330 = vmatpush2.msra.mxu0 0.0
    %331 = vmatprep.subr.mxu0 0.0
    %332 = vmatpush2.msra.mxu0 0.0
    %333 = vmatprep.subr.mxu0 0.0
    %334 = vmatpush2.msra.mxu0 0.0
    %335 = vmatprep.mubr.f32.mxu0 0.0
    %336 = vmatmul.mubr.f32.gmra.mxu0 %v80
    %v337 = vpop.f32.mrf.mxu0
    %v338 = vadd.f32 0.0, %v337
    %v339 = vpop.f32.mrf.mxu0
    %340 = vmatprep.mubr.f32.mxu0 0.0
    %341 = vmatmul.mubr.f32.gmra.mxu0 %v83
    %v342 = vpop.f32.mrf.mxu0
    %v343 = vadd.f32 0.0, %v342
    %v344 = vpop.f32.mrf.mxu0
    %345 = vmatprep.mubr.f32.mxu0 0.0
    %346 = vmatmul.mubr.f32.gmra.mxu0 %v86
    %v347 = vpop.f32.mrf.mxu0
    %v348 = vadd.f32 0.0, %v347
    %v349 = vpop.f32.mrf.mxu0
    %350 = vmatprep.mubr.f32.mxu0 0.0
    %351 = vmatmul.mubr.f32.gmra.mxu0 %v89
    %v352 = vpop.f32.mrf.mxu0
    %v353 = vadd.f32 0.0, %v352
    %v354 = vpop.f32.mrf.mxu0
    %355 = vmatprep.mubr.f32.mxu0 0.0
    %356 = vmatmul.mubr.f32.gmra.mxu0 %v92
    %v357 = vpop.f32.mrf.mxu0
    %v358 = vadd.f32 0.0, %v357
    %v359 = vpop.f32.mrf.mxu0
    %360 = vmatprep.mubr.f32.mxu0 0.0
    %361 = vmatmul.mubr.f32.gmra.mxu0 %v95
    %v362 = vpop.f32.mrf.mxu0
    %v363 = vadd.f32 0.0, %v362
    %v364 = vpop.f32.mrf.mxu0
    %365 = vmatprep.mubr.f32.mxu0 0.0
    %366 = vmatmul.mubr.f32.gmra.mxu0 %v98
    %v367 = vpop.f32.mrf.mxu0
    %v368 = vadd.f32 0.0, %v367
    %v369 = vpop.f32.mrf.mxu0
    %370 = vmatprep.mubr.f32.mxu0 0.0
    %371 = vmatmul.mubr.f32.gmra.mxu0 %v101
    %v372 = vpop.f32.mrf.mxu0
    %v373 = vadd.f32 0.0, %v372
    %v374 = vpop.f32.mrf.mxu0
    %375 = vmatprep.mubr.f32.mxu0 0.0
    %376 = vmatmul.mubr.f32.gmra.mxu0 %v104
    %v377 = vpop.f32.mrf.mxu0
    %v378 = vadd.f32 0.0, %v377
    %v379 = vpop.f32.mrf.mxu0
    %380 = vmatprep.mubr.f32.mxu0 0.0
    %381 = vmatmul.mubr.f32.gmra.mxu0 %v107
    %v382 = vpop.f32.mrf.mxu0
    %v383 = vadd.f32 0.0, %v382
    %v384 = vpop.f32.mrf.mxu0
    %385 = vmatprep.mubr.f32.mxu0 0.0
    %386 = vmatmul.mubr.f32.gmra.mxu0 %v110
    %v387 = vpop.f32.mrf.mxu0
    %v388 = vadd.f32 0.0, %v387
    %v389 = vpop.f32.mrf.mxu0
    %390 = vmatprep.mubr.f32.mxu0 0.0
    %391 = vmatmul.mubr.f32.gmra.mxu0 %v113
    %v392 = vpop.f32.mrf.mxu0
    %v393 = vadd.f32 0.0, %v392
    %v394 = vpop.f32.mrf.mxu0
    %395 = vmatprep.mubr.f32.mxu0 0.0
    %396 = vmatmul.mubr.f32.gmra.mxu0 %v116
    %v397 = vpop.f32.mrf.mxu0
    %v398 = vadd.f32 0.0, %v397
    %v399 = vpop.f32.mrf.mxu0
    %400 = vmatprep.mubr.f32.mxu0 0.0
    %401 = vmatmul.mubr.f32.gmra.mxu0 %v119
    %v402 = vpop.f32.mrf.mxu0
    %v403 = vadd.f32 0.0, %v402
    %v404 = vpop.f32.mrf.mxu0
    %405 = vmatprep.mubr.f32.mxu0 0.0
    %406 = vmatmul.mubr.f32.gmra.mxu0 %v122
    %v407 = vpop.f32.mrf.mxu0
    %v408 = vadd.f32 0.0, %v407
    %v409 = vpop.f32.mrf.mxu0
    %410 = vmatprep.mubr.f32.mxu0 0.0
    %411 = vmatmul.mubr.f32.gmra.mxu0 %v125
    %v412 = vpop.f32.mrf.mxu0
    %v413 = vadd.f32 0.0, %v412
    %v414 = vpop.f32.mrf.mxu0
    %415 = vmatprep.mubr.f32.mxu0 0.0
    %416 = vmatmul.mubr.f32.gmra.mxu0 %v128
    %v417 = vpop.f32.mrf.mxu0
    %v418 = vadd.f32 0.0, %v417
    %v419 = vpop.f32.mrf.mxu0
    %420 = vmatprep.mubr.f32.mxu0 0.0
    %421 = vmatmul.mubr.f32.gmra.mxu0 %v131
    %v422 = vpop.f32.mrf.mxu0
    %v423 = vadd.f32 0.0, %v422
    %v424 = vpop.f32.mrf.mxu0
    %425 = vmatprep.mubr.f32.mxu0 0.0
    %426 = vmatmul.mubr.f32.gmra.mxu0 %v134
    %v427 = vpop.f32.mrf.mxu0
    %v428 = vadd.f32 0.0, %v427
    %v429 = vpop.f32.mrf.mxu0
    %430 = vmatprep.mubr.f32.mxu0 0.0
    %431 = vmatmul.mubr.f32.gmra.mxu0 %v137
    %v432 = vpop.f32.mrf.mxu0
    %v433 = vadd.f32 0.0, %v432
    %v434 = vpop.f32.mrf.mxu0
    %435 = vmatprep.mubr.f32.mxu0 0.0
    %436 = vmatmul.mubr.f32.gmra.mxu0 %v140
    %v437 = vpop.f32.mrf.mxu0
    %v438 = vadd.f32 0.0, %v437
    %v439 = vpop.f32.mrf.mxu0
    %440 = vmatprep.mubr.f32.mxu0 0.0
    %441 = vmatmul.mubr.f32.gmra.mxu0 %v143
    %v442 = vpop.f32.mrf.mxu0
    %v443 = vadd.f32 0.0, %v442
    %v444 = vpop.f32.mrf.mxu0
    %445 = vmatprep.mubr.f32.mxu0 0.0
    %446 = vmatmul.mubr.f32.gmra.mxu0 %v146
    %v447 = vpop.f32.mrf.mxu0
    %v448 = vadd.f32 0.0, %v447
    %v449 = vpop.f32.mrf.mxu0
    %450 = vmatprep.mubr.f32.mxu0 0.0
    %451 = vmatmul.mubr.f32.gmra.mxu0 %v149
    %v452 = vpop.f32.mrf.mxu0
    %v453 = vadd.f32 0.0, %v452
    %v454 = vpop.f32.mrf.mxu0
    %455 = vmatprep.mubr.f32.mxu0 0.0
    %456 = vmatmul.mubr.f32.gmra.mxu0 %v152
    %v457 = vpop.f32.mrf.mxu0
    %v458 = vadd.f32 0.0, %v457
    %v459 = vpop.f32.mrf.mxu0
    %460 = vmatprep.mubr.f32.mxu0 0.0
    %461 = vmatmul.mubr.f32.gmra.mxu0 %v155
    %v462 = vpop.f32.mrf.mxu0
    %v463 = vadd.f32 0.0, %v462
    %v464 = vpop.f32.mrf.mxu0
    %465 = vmatprep.mubr.f32.mxu0 0.0
    %466 = vmatmul.mubr.f32.gmra.mxu0 %v158
    %v467 = vpop.f32.mrf.mxu0
    %v468 = vadd.f32 0.0, %v467
    %v469 = vpop.f32.mrf.mxu0
    %470 = vmatprep.mubr.f32.mxu0 0.0
    %471 = vmatmul.mubr.f32.gmra.mxu0 %v161
    %v472 = vpop.f32.mrf.mxu0
    %v473 = vadd.f32 0.0, %v472
    %v474 = vpop.f32.mrf.mxu0
    %475 = vmatprep.mubr.f32.mxu0 0.0
    %476 = vmatmul.mubr.f32.gmra.mxu0 %v164
    %v477 = vpop.f32.mrf.mxu0
    %v478 = vadd.f32 0.0, %v477
    %v479 = vpop.f32.mrf.mxu0
    %480 = vmatprep.mubr.f32.mxu0 0.0
    %481 = vmatmul.mubr.f32.gmra.mxu0 %v167
    %v482 = vpop.f32.mrf.mxu0
    %v483 = vadd.f32 0.0, %v482
    %v484 = vpop.f32.mrf.mxu0
    %485 = vmatprep.mubr.f32.mxu0 0.0
    %486 = vmatmul.mubr.f32.gmra.mxu0 %v170
    %v487 = vpop.f32.mrf.mxu0
    %v488 = vadd.f32 0.0, %v487
    %v489 = vpop.f32.mrf.mxu0
    %490 = vmatprep.mubr.f32.mxu0 0.0
    %491 = vmatmul.mubr.f32.gmra.mxu0 %v173
    %v492 = vpop.f32.mrf.mxu0
    %v493 = vadd.f32 0.0, %v492
    %v494 = vpop.f32.mrf.mxu0
    %495 = vmatprep.mubr.f32.mxu0 0.0
    %496 = vmatmul.mubr.f32.gmra.mxu0 %v176
    %v497 = vpop.f32.mrf.mxu0
    %v498 = vadd.f32 0.0, %v497
    %v499 = vpop.f32.mrf.mxu0
    %500 = vmatprep.mubr.f32.mxu0 0.0
    %501 = vmatmul.mubr.f32.gmra.mxu0 %v179
    %v502 = vpop.f32.mrf.mxu0
    %v503 = vadd.f32 0.0, %v502
    %v504 = vpop.f32.mrf.mxu0
    %505 = vmatprep.mubr.f32.mxu0 0.0
    %506 = vmatmul.mubr.f32.gmra.mxu0 %v182
    %v507 = vpop.f32.mrf.mxu0
    %v508 = vadd.f32 0.0, %v507
    %v509 = vpop.f32.mrf.mxu0
    %510 = vmatprep.mubr.f32.mxu0 0.0
    %511 = vmatmul.mubr.f32.gmra.mxu0 %v185
    %v512 = vpop.f32.mrf.mxu0
    %v513 = vadd.f32 0.0, %v512
    %v514 = vpop.f32.mrf.mxu0
    %515 = vmatprep.mubr.f32.mxu0 0.0
    %516 = vmatmul.mubr.f32.gmra.mxu0 %v188
    %v517 = vpop.f32.mrf.mxu0
    %v518 = vadd.f32 0.0, %v517
    %v519 = vpop.f32.mrf.mxu0
    %520 = vmatprep.mubr.f32.mxu0 0.0
    %521 = vmatmul.mubr.f32.gmra.mxu0 %v191
    %v522 = vpop.f32.mrf.mxu0
    %v523 = vadd.f32 0.0, %v522
    %v524 = vpop.f32.mrf.mxu0
    %525 = vmatprep.mubr.f32.mxu0 0.0
    %526 = vmatmul.mubr.f32.gmra.mxu0 %v194
    %v527 = vpop.f32.mrf.mxu0
    %v528 = vadd.f32 0.0, %v527
    %v529 = vpop.f32.mrf.mxu0
    %530 = vmatprep.mubr.f32.mxu0 0.0
    %531 = vmatmul.mubr.f32.gmra.mxu0 %v197
    %v532 = vpop.f32.mrf.mxu0
    %v533 = vadd.f32 0.0, %v532
    %v534 = vpop.f32.mrf.mxu0
    %535 = vmatprep.mubr.f32.mxu0 0.0
    %536 = vmatmul.mubr.f32.gmra.mxu0 %v200
    %v537 = vpop.f32.mrf.mxu0
    %v538 = vadd.f32 0.0, %v537
    %v539 = vpop.f32.mrf.mxu0
    %540 = vmatprep.mubr.f32.mxu0 0.0
    %541 = vmatmul.mubr.f32.gmra.mxu0 %v203
    %v542 = vpop.f32.mrf.mxu0
    %v543 = vadd.f32 0.0, %v542
    %v544 = vpop.f32.mrf.mxu0
    %545 = vmatprep.mubr.f32.mxu0 0.0
    %546 = vmatmul.mubr.f32.gmra.mxu0 %v206
    %v547 = vpop.f32.mrf.mxu0
    %v548 = vadd.f32 0.0, %v547
    %v549 = vpop.f32.mrf.mxu0
    %550 = vmatprep.mubr.f32.mxu0 0.0
    %551 = vmatmul.mubr.f32.gmra.mxu0 %v209
    %v552 = vpop.f32.mrf.mxu0
    %v553 = vadd.f32 0.0, %v552
    %v554 = vpop.f32.mrf.mxu0
    %555 = vmatprep.mubr.f32.mxu0 0.0
    %556 = vmatmul.mubr.f32.gmra.mxu0 %v212
    %v557 = vpop.f32.mrf.mxu0
    %v558 = vadd.f32 0.0, %v557
    %v559 = vpop.f32.mrf.mxu0
    %560 = vmatprep.mubr.f32.mxu0 0.0
    %561 = vmatmul.mubr.f32.gmra.mxu0 %v215
    %v562 = vpop.f32.mrf.mxu0
    %v563 = vadd.f32 0.0, %v562
    %v564 = vpop.f32.mrf.mxu0
    %565 = vmatprep.mubr.f32.mxu0 0.0
    %566 = vmatmul.mubr.f32.gmra.mxu0 %v218
    %v567 = vpop.f32.mrf.mxu0
    %v568 = vadd.f32 0.0, %v567
    %v569 = vpop.f32.mrf.mxu0
    %570 = vmatprep.mubr.f32.mxu0 0.0
    %571 = vmatmul.mubr.f32.gmra.mxu0 %v221
    %v572 = vpop.f32.mrf.mxu0
    %v573 = vadd.f32 0.0, %v572
    %v574 = vpop.f32.mrf.mxu0
    %575 = vmatprep.mubr.f32.mxu0 0.0
    %576 = vmatmul.mubr.f32.gmra.mxu0 %v224
    %v577 = vpop.f32.mrf.mxu0
    %v578 = vadd.f32 0.0, %v577
    %v579 = vpop.f32.mrf.mxu0
    %580 = vmatprep.mubr.f32.mxu0 0.0
    %581 = vmatmul.mubr.f32.gmra.mxu0 %v227
    %v582 = vpop.f32.mrf.mxu0
    %v583 = vadd.f32 0.0, %v582
    %v584 = vpop.f32.mrf.mxu0
    %585 = vmatprep.mubr.f32.mxu0 0.0
    %586 = vmatmul.mubr.f32.gmra.mxu0 %v230
    %v587 = vpop.f32.mrf.mxu0
    %v588 = vadd.f32 0.0, %v587
    %v589 = vpop.f32.mrf.mxu0
    %590 = vmatprep.mubr.f32.mxu0 0.0
    %591 = vmatmul.mubr.f32.gmra.mxu0 %v233
    %v592 = vpop.f32.mrf.mxu0
    %v593 = vadd.f32 0.0, %v592
    %v594 = vpop.f32.mrf.mxu0
    %595 = vmatprep.mubr.f32.mxu0 0.0
    %596 = vmatmul.mubr.f32.gmra.mxu0 %v236
    %v597 = vpop.f32.mrf.mxu0
    %v598 = vadd.f32 0.0, %v597
    %v599 = vpop.f32.mrf.mxu0
    %600 = vmatprep.mubr.f32.mxu0 0.0
    %601 = vmatmul.mubr.f32.gmra.mxu0 %v239
    %v602 = vpop.f32.mrf.mxu0
    %v603 = vadd.f32 0.0, %v602
    %v604 = vpop.f32.mrf.mxu0
    %605 = vmatprep.mubr.f32.mxu0 0.0
    %606 = vmatmul.mubr.f32.gmra.mxu0 %v242
    %v607 = vpop.f32.mrf.mxu0
    %v608 = vadd.f32 0.0, %v607
    %v609 = vpop.f32.mrf.mxu0
    %610 = vmatprep.mubr.f32.mxu0 0.0
    %611 = vmatmul.mubr.f32.gmra.mxu0 %v245
    %v612 = vpop.f32.mrf.mxu0
    %v613 = vadd.f32 0.0, %v612
    %v614 = vpop.f32.mrf.mxu0
    %615 = vmatprep.mubr.f32.mxu0 0.0
    %616 = vmatmul.mubr.f32.gmra.mxu0 %v248
    %v617 = vpop.f32.mrf.mxu0
    %v618 = vadd.f32 0.0, %v617
    %v619 = vpop.f32.mrf.mxu0
    %620 = vmatprep.mubr.f32.mxu0 0.0
    %621 = vmatmul.mubr.f32.gmra.mxu0 %v251
    %v622 = vpop.f32.mrf.mxu0
    %v623 = vadd.f32 0.0, %v622
    %v624 = vpop.f32.mrf.mxu0
    %625 = vmatprep.mubr.f32.mxu0 0.0
    %626 = vmatmul.mubr.f32.gmra.mxu0 %v254
    %v627 = vpop.f32.mrf.mxu0
    %v628 = vadd.f32 0.0, %v627
    %v629 = vpop.f32.mrf.mxu0
    %630 = vmatprep.mubr.f32.mxu0 0.0
    %631 = vmatmul.mubr.f32.gmra.mxu0 %v257
    %v632 = vpop.f32.mrf.mxu0
    %v633 = vadd.f32 0.0, %v632
    %v634 = vpop.f32.mrf.mxu0
    %635 = vmatprep.mubr.f32.mxu0 0.0
    %636 = vmatmul.mubr.f32.gmra.mxu0 %v260
    %v637 = vpop.f32.mrf.mxu0
    %v638 = vadd.f32 0.0, %v637
    %v639 = vpop.f32.mrf.mxu0
    %640 = vmatprep.mubr.f32.mxu0 0.0
    %641 = vmatmul.mubr.f32.gmra.mxu0 %v263
    %v642 = vpop.f32.mrf.mxu0
    %v643 = vadd.f32 0.0, %v642
    %v644 = vpop.f32.mrf.mxu0
    %645 = vmatprep.mubr.f32.mxu0 0.0
    %646 = vmatmul.mubr.f32.gmra.mxu0 %v266
    %v647 = vpop.f32.mrf.mxu0
    %v648 = vadd.f32 0.0, %v647
    %v649 = vpop.f32.mrf.mxu0
    %650 = vmatprep.mubr.f32.mxu0 0.0
    %651 = vmatmul.mubr.f32.gmra.mxu0 %v269
    %v652 = vpop.f32.mrf.mxu0
    %v653 = vadd.f32 0.0, %v652
    %v654 = vpop.f32.mrf.mxu0
    %655 = vdwg.mxu0
    %v656 = vmax.f32 %v338, %v358
    %v657 = vmax.f32 %v343, %v363
    %v658 = vmax.f32 %v348, %v368
    %v659 = vmax.f32 %v353, %v373
    %v660 = vmax.f32 %v656, %v378
    %v661 = vmax.f32 %v657, %v383
    %v662 = vmax.f32 %v658, %v388
    %v663 = vmax.f32 %v659, %v393
    %v664 = vmax.f32 %v660, %v398
    %v665 = vmax.f32 %v661, %v403
    %v666 = vmax.f32 %v662, %v408
    %v667 = vmax.f32 %v663, %v413
    %v668 = vmax.f32 %v664, %v418
    %v669 = vmax.f32 %v665, %v423
    %v670 = vmax.f32 %v666, %v428
    %v671 = vmax.f32 %v667, %v433
    %v672 = vmax.f32 %v668, %v438
    %v673 = vmax.f32 %v669, %v443
    %v674 = vmax.f32 %v670, %v448
    %v675 = vmax.f32 %v671, %v453
    %v676 = vmax.f32 %v672, %v458
    %v677 = vmax.f32 %v673, %v463
    %v678 = vmax.f32 %v674, %v468
    %v679 = vmax.f32 %v675, %v473
    %v680 = vmax.f32 %v676, %v478
    %v681 = vmax.f32 %v677, %v483
    %v682 = vmax.f32 %v678, %v488
    %v683 = vmax.f32 %v679, %v493
    %v684 = vmax.f32 %v680, %v498
    %v685 = vmax.f32 %v681, %v503
    %v686 = vmax.f32 %v682, %v508
    %v687 = vmax.f32 %v683, %v513
    %v688 = vmax.f32 %v684, %v518
    %v689 = vmax.f32 %v685, %v523
    %v690 = vmax.f32 %v686, %v528
    %v691 = vmax.f32 %v687, %v533
    %v692 = vmax.f32 %v688, %v538
    %v693 = vmax.f32 %v689, %v543
    %v694 = vmax.f32 %v690, %v548
    %v695 = vmax.f32 %v691, %v553
    %v696 = vmax.f32 %v692, %v558
    %v697 = vmax.f32 %v693, %v563
    %v698 = vmax.f32 %v694, %v568
    %v699 = vmax.f32 %v695, %v573
    %v700 = vmax.f32 %v696, %v578
    %v701 = vmax.f32 %v697, %v583
    %v702 = vmax.f32 %v698, %v588
    %v703 = vmax.f32 %v699, %v593
    %v704 = vmax.f32 %v700, %v598
    %v705 = vmax.f32 %v701, %v603
    %v706 = vmax.f32 %v702, %v608
    %v707 = vmax.f32 %v703, %v613
    %v708 = vmax.f32 %v704, %v618
    %v709 = vmax.f32 %v705, %v623
    %v710 = vmax.f32 %v706, %v628
    %v711 = vmax.f32 %v707, %v633
    %v712 = vmax.f32 %v708, %v638
    %v713 = vmax.f32 %v709, %v643
    %v714 = vmax.f32 %v710, %v648
    %v715 = vmax.f32 %v711, %v653
    %v716 = vmax.f32 %v712, %v713
    %v717 = vmax.f32 %v714, %v715
    %v718 = vmax.f32 %v716, %v717
    %v719 = vrot.slane %v718, 4
    %v720 = vmax.f32 %v718, %v719
    %v721 = vrot.slane %v720, 2
    %v722 = vmax.f32 %v720, %v721
    %v723 = vrot.slane %v722, 1
    %v724 = vmax.f32 %v722, %v723
    %v725 = vxor.u32 %v724, 2147483648
    %v726 = vmul.f32 %v725, 1.442695
    %v727 = vpow.pop %v726
    %v728 = vadd.f32 %v727, 1.0
    %v729 = vrcp.pop %v728
    %v730 = vmul.f32 1.0, %v729
    %731 = vst [vmem:[#allocation2] sm:$0x1] %v730
    // Predicated region
    $region10: #{tpu_custom_call.1} parent=1 // pred_check
      _
    $region11: #{tpu_custom_call.1} parent=1 // pred_check_branch
      %733 = sbr.rel (0) target = $region13
    $region12: #{tpu_custom_call.1} parent=1 // pred_region
      %s735 = ssub.s32 16, 16
      %736 = vsyncadd [#allocation3], %s735
      %s738 = sshll.u32 [#allocation2], 4
      %s739 = int_to_ptr.vmem [resolvable:$true] %s738
      %741 = dma.vmem_to_hbm [thread:$0]  %s739, 16, %s2, [#allocation3]
    $region13: #{tpu_custom_call.1} parent=1 // pred_fallthru
      _
    // Predicated region
    $region14: #{tpu_custom_call.1} parent=1 // pred_check
      _
    $region15: #{tpu_custom_call.1} parent=1 // pred_check_branch
      %743 = sbr.rel (0) target = $region17
    $region16: #{tpu_custom_call.1} parent=1 // pred_region
      %744 = dma.done [#allocation3], 16
    $region17: #{tpu_custom_call.1} parent=1 // pred_fallthru
      _
    %745 = vsyncpa [#allocation3], 1

</llo_original>
